<compile_context>
chip_gen: v5e
topology: v5e:2x2
jax: 0.10.0
libtpu: 0.0.40
codegen_flags: <defaults>
</compile_context>

<pallas_src>
import jax
import jax.numpy as jnp
from jax.experimental import pallas as pl
from jax.experimental.pallas import tpu as pltpu


# ----- model dims (module instantiated with player_out=16, class_pos_out=8, team_sched_out=8) -----
PLAYER_IN, CLASS_POS_IN, TEAM_SCHED_IN = 73, 39, 27
PLAYER_OUT, CLASS_POS_OUT, TEAM_SCHED_OUT = 16, 8, 8
FINAL_IN = PLAYER_OUT + 2 * CLASS_POS_OUT + 2 * TEAM_SCHED_OUT   # 48
FINAL_OUT = 43

LANES = 128

# homogeneous-coordinate lane per branch (holds constant 1.0 so the bias folds into the matmul)
P_HOM, CP_HOM, TS_HOM = PLAYER_IN, CLASS_POS_IN, TEAM_SCHED_IN   # 73, 39, 27

# ----- packed parameter slab layout: (1032, 128) f32, all blocks (8,128)-tile aligned -----
R_W_P = 0         # rows    0:128  player_layer1 weight (lanes 0:16), bias folded into row 73
R_W_CP = 128      # rows  128:256  class_pos_layer1 weight (lanes 0:8), bias in row 128+39
R_W_TS = 256      # rows  256:384  team_sched_layer1 weight (lanes 0:8), bias in row 256+27
R_WF_P = 384      # rows  384:512  layer_final rows  0:16 -> lanes 0:43 (zero-padded)
R_WF_OCP = 512    # rows  512:640  layer_final rows 16:24
R_WF_XCP = 640    # rows  640:768  layer_final rows 24:32
R_WF_OTS = 768    # rows  768:896  layer_final rows 32:40
R_WF_XTS = 896    # rows  896:1024 layer_final rows 40:48
R_B_F = 1024      # row  1024      layer_final bias, lanes 0:43
SLAB_ROWS = 1032


def _ceil8(n):
    return -(-n // 8) * 8


def pack_params(params):
    """Pack all weights/biases into one tile-aligned (1032, 128) f32 slab (once, host side)."""
    slab = jnp.zeros((SLAB_ROWS, LANES), jnp.float32)
    slab = slab.at[R_W_P:R_W_P + PLAYER_IN, 0:PLAYER_OUT].set(params["w_p"])
    slab = slab.at[R_W_P + P_HOM, 0:PLAYER_OUT].set(params["b_p"][0])
    slab = slab.at[R_W_CP:R_W_CP + CLASS_POS_IN, 0:CLASS_POS_OUT].set(params["w_cp"])
    slab = slab.at[R_W_CP + CP_HOM, 0:CLASS_POS_OUT].set(params["b_cp"][0])
    slab = slab.at[R_W_TS:R_W_TS + TEAM_SCHED_IN, 0:TEAM_SCHED_OUT].set(params["w_ts"])
    slab = slab.at[R_W_TS + TS_HOM, 0:TEAM_SCHED_OUT].set(params["b_ts"][0])
    wf = params["w_f"]
    slab = slab.at[R_WF_P:R_WF_P + PLAYER_OUT, 0:FINAL_OUT].set(wf[0:16])
    slab = slab.at[R_WF_OCP:R_WF_OCP + CLASS_POS_OUT, 0:FINAL_OUT].set(wf[16:24])
    slab = slab.at[R_WF_XCP:R_WF_XCP + CLASS_POS_OUT, 0:FINAL_OUT].set(wf[24:32])
    slab = slab.at[R_WF_OTS:R_WF_OTS + TEAM_SCHED_OUT, 0:FINAL_OUT].set(wf[32:40])
    slab = slab.at[R_WF_XTS:R_WF_XTS + TEAM_SCHED_OUT, 0:FINAL_OUT].set(wf[40:48])
    slab = slab.at[R_B_F, 0:FINAL_OUT].set(params["b_f"][0])
    return slab


def _make_layout(n_player, n_cp, n_ts):
    """Static per-example row layout of the activation slab (all offsets 8-aligned)."""
    p8, cp8, ts8 = _ceil8(n_player), _ceil8(n_cp), _ceil8(n_ts)
    p_off = 0
    ocp_off = p_off + p8
    xcp_off = ocp_off + cp8
    ots_off = xcp_off + cp8
    xts_off = ots_off + ts8
    rows = xts_off + ts8
    return dict(n_player=n_player, n_cp=n_cp, n_ts=n_ts,
                p8=p8, cp8=cp8, ts8=ts8,
                p_off=p_off, ocp_off=ocp_off, xcp_off=xcp_off,
                ots_off=ots_off, xts_off=xts_off, rows=rows)


def pack_inputs(player_x, own_cp, opp_cp, own_ts, opp_ts, L):
    """Pack all activations of a batch into one (B, ROWS, 128) f32 slab."""
    B = player_x.shape[0]
    ocp = own_cp.reshape(B, L["n_cp"], CLASS_POS_IN)
    xcp = opp_cp.reshape(B, L["n_cp"], CLASS_POS_IN)
    slab = jnp.zeros((B, L["rows"], LANES), jnp.float32)
    slab = slab.at[:, L["p_off"]:L["p_off"] + L["n_player"], 0:PLAYER_IN].set(player_x)
    slab = slab.at[:, L["p_off"]:L["p_off"] + L["n_player"], P_HOM].set(1.0)
    slab = slab.at[:, L["ocp_off"]:L["ocp_off"] + L["n_cp"], 0:CLASS_POS_IN].set(ocp)
    slab = slab.at[:, L["ocp_off"]:L["ocp_off"] + L["n_cp"], CP_HOM].set(1.0)
    slab = slab.at[:, L["xcp_off"]:L["xcp_off"] + L["n_cp"], 0:CLASS_POS_IN].set(xcp)
    slab = slab.at[:, L["xcp_off"]:L["xcp_off"] + L["n_cp"], CP_HOM].set(1.0)
    slab = slab.at[:, L["ots_off"]:L["ots_off"] + L["n_ts"], 0:TEAM_SCHED_IN].set(own_ts)
    slab = slab.at[:, L["ots_off"]:L["ots_off"] + L["n_ts"], TS_HOM].set(1.0)
    slab = slab.at[:, L["xts_off"]:L["xts_off"] + L["n_ts"], 0:TEAM_SCHED_IN].set(opp_ts)
    slab = slab.at[:, L["xts_off"]:L["xts_off"] + L["n_ts"], TS_HOM].set(1.0)
    return slab


def _masked_logsoftmax(h, n_valid):
    """Last-dim logsoftmax over lanes [0, n_valid); invalid lanes come out exactly 0."""
    lane = jax.lax.broadcasted_iota(jnp.int32, h.shape, 1)
    valid = lane < n_valid
    hm = jnp.where(valid, h, jnp.float32(-1e30))
    m = jnp.max(hm, axis=-1, keepdims=True)
    lse = jnp.log(jnp.sum(jnp.exp(hm - m), axis=-1, keepdims=True)) + m
    return jnp.where(valid, h - lse, 0.0)


def _mean_selector(n_cols, start, count):
    """(1, n_cols) row vector with 1/count in columns [start, start+count), 0 elsewhere."""
    col = jax.lax.broadcasted_iota(jnp.int32, (1, n_cols), 1)
    return jnp.where((col >= start) & (col < start + count),
                     jnp.float32(1.0 / count), jnp.float32(0.0))


def make_kernel(L):
    p_off, p8 = L["p_off"], L["p8"]
    ocp_off, cp8 = L["ocp_off"], L["cp8"]
    ots_off, ts8 = L["ots_off"], L["ts8"]
    n_p, n_cp, n_ts = L["n_player"], L["n_cp"], L["n_ts"]
    cp_rows, ts_rows = 2 * cp8, 2 * ts8

    def kernel(act_ref, w_ref, out_ref):
        act = act_ref[0]                                           # (ROWS, 128)

        # ---- branch matmuls (biases folded via the homogeneous 1.0 lane) ----
        h_p = jnp.dot(act[p_off:p_off + p8], w_ref[R_W_P:R_W_P + LANES, :],
                      preferred_element_type=jnp.float32)          # (p8, 128)
        h_cp = jnp.dot(act[ocp_off:ocp_off + cp_rows], w_ref[R_W_CP:R_W_CP + LANES, :],
                       preferred_element_type=jnp.float32)         # (2*cp8, 128)
        h_ts = jnp.dot(act[ots_off:ots_off + ts_rows], w_ref[R_W_TS:R_W_TS + LANES, :],
                       preferred_element_type=jnp.float32)         # (2*ts8, 128)

        ls_p = _masked_logsoftmax(h_p, PLAYER_OUT)
        ls_cp = _masked_logsoftmax(h_cp, CLASS_POS_OUT)
        ls_ts = _masked_logsoftmax(h_ts, TEAM_SCHED_OUT)

        # ---- segment means via selector matmuls (padding rows get zero weight) ----
        mean_p = jnp.dot(_mean_selector(p8, 0, n_p), ls_p,
                         preferred_element_type=jnp.float32)        # (1, 128)
        mean_ocp = jnp.dot(_mean_selector(cp_rows, 0, n_cp), ls_cp,
                           preferred_element_type=jnp.float32)
        mean_xcp = jnp.dot(_mean_selector(cp_rows, cp8, n_cp), ls_cp,
                           preferred_element_type=jnp.float32)
        mean_ots = jnp.dot(_mean_selector(ts_rows, 0, n_ts), ls_ts,
                           preferred_element_type=jnp.float32)
        mean_xts = jnp.dot(_mean_selector(ts_rows, ts8, n_ts), ls_ts,
                           preferred_element_type=jnp.float32)

        # ---- final layer: accumulated per-segment dots (no lane concatenate) ----
        res = (jnp.dot(mean_p, w_ref[R_WF_P:R_WF_P + LANES, :],
                       preferred_element_type=jnp.float32)
               + jnp.dot(mean_ocp, w_ref[R_WF_OCP:R_WF_OCP + LANES, :],
                         preferred_element_type=jnp.float32)
               + jnp.dot(mean_xcp, w_ref[R_WF_XCP:R_WF_XCP + LANES, :],
                         preferred_element_type=jnp.float32)
               + jnp.dot(mean_ots, w_ref[R_WF_OTS:R_WF_OTS + LANES, :],
                         preferred_element_type=jnp.float32)
               + jnp.dot(mean_xts, w_ref[R_WF_XTS:R_WF_XTS + LANES, :],
                         preferred_element_type=jnp.float32)
               + w_ref[R_B_F:R_B_F + 1, :])                         # (1, 128)
        out_ref[0] = jnp.broadcast_to(jnp.maximum(res, 0.0), (8, LANES))

    return kernel


@jax.jit
def nn_v2_forward(player_x, own_cp, opp_cp, own_ts, opp_ts, param_slab):
    """Batched forward: inputs carry a leading batch axis, per-example row counts are shared."""
    B = player_x.shape[0]
    n_cp = own_cp.shape[1] * own_cp.shape[2]
    L = _make_layout(player_x.shape[1], n_cp, own_ts.shape[1])
    act = pack_inputs(player_x, own_cp, opp_cp, own_ts, opp_ts, L)

    out = pl.pallas_call(
        make_kernel(L),
        out_shape=jax.ShapeDtypeStruct((B, 8, LANES), jnp.float32),
        grid=(B,),
        in_specs=[
            pl.BlockSpec((1, L["rows"], LANES), lambda b: (b, 0, 0)),   # per-example activations
            pl.BlockSpec((SLAB_ROWS, LANES), lambda b: (0, 0)),         # params: constant -> resident
        ],
        out_specs=pl.BlockSpec((1, 8, LANES), lambda b: (b, 0, 0)),
        compiler_params=pltpu.CompilerParams(
            dimension_semantics=("parallel",)),
    )(act, param_slab)
    return out[:, 0, :FINAL_OUT]                                        # (B, 43)


def _init_params(key):
    """Deterministic PyTorch-style uniform(-1/sqrt(in), 1/sqrt(in)) init."""
    def linear(key, fan_in, fan_out):
        k1, k2 = jax.random.split(key)
        bound = 1.0 / jnp.sqrt(float(fan_in))
        w = jax.random.uniform(k1, (fan_in, fan_out), jnp.float32, -bound, bound)
        b = jax.random.uniform(k2, (1, fan_out), jnp.float32, -bound, bound)
        return w, b

    k_p, k_cp, k_ts, k_f = jax.random.split(key, 4)
    w_p, b_p = linear(k_p, PLAYER_IN, PLAYER_OUT)
    w_cp, b_cp = linear(k_cp, CLASS_POS_IN, CLASS_POS_OUT)
    w_ts, b_ts = linear(k_ts, TEAM_SCHED_IN, TEAM_SCHED_OUT)
    w_f, b_f = linear(k_f, FINAL_IN, FINAL_OUT)
    return dict(w_p=w_p, b_p=b_p, w_cp=w_cp, b_cp=b_cp,
                w_ts=w_ts, b_ts=b_ts, w_f=w_f, b_f=b_f)


def _reference_single(player_x, own_cp, opp_cp, own_ts, opp_ts, p):
    """Pure-JAX per-example reference matching the PyTorch forward (eval-mode dropout)."""
    def branch(x, w, b):
        h = x @ w + b
        return jnp.mean(jax.nn.log_softmax(h, axis=-1), axis=0)
    player = branch(player_x, p["w_p"], p["b_p"])
    o_cp = branch(own_cp.reshape(-1, CLASS_POS_IN), p["w_cp"], p["b_cp"])
    x_cp = branch(opp_cp.reshape(-1, CLASS_POS_IN), p["w_cp"], p["b_cp"])
    o_ts = branch(own_ts, p["w_ts"], p["b_ts"])
    x_ts = branch(opp_ts, p["w_ts"], p["b_ts"])
    cat = jnp.concatenate([player, o_cp, x_cp, o_ts, x_ts])
    return jax.nn.relu(cat @ p["w_f"] + p["b_f"][0])


if __name__ == "__main__":
    key = jax.random.PRNGKey(0)
    k0, k1, k2, k3, k4, k5 = jax.random.split(key, 6)

    params = _init_params(k0)
    param_slab = jax.block_until_ready(pack_params(params))  # packed once, reused every call

    B = 8  # batch of examples processed by a single pallas_call
    player_x = jax.random.normal(k1, (B, 8, PLAYER_IN), jnp.float32)
    own_cp = jax.random.normal(k2, (B, 4, 5, CLASS_POS_IN), jnp.float32)
    opp_cp = jax.random.normal(k3, (B, 4, 5, CLASS_POS_IN), jnp.float32)
    own_ts = jax.random.normal(k4, (B, 6, TEAM_SCHED_IN), jnp.float32)
    opp_ts = jax.random.normal(k5, (B, 6, TEAM_SCHED_IN), jnp.float32)

    out = nn_v2_forward(player_x, own_cp, opp_cp, own_ts, opp_ts, param_slab)
    out = jax.block_until_ready(out)

    ref = jax.vmap(lambda a, b_, c, d, e: _reference_single(a, b_, c, d, e, params))(
        player_x, own_cp, opp_cp, own_ts, opp_ts)

    assert out.shape == (B, FINAL_OUT)
    max_err = jnp.max(jnp.abs(out - ref))
    assert jnp.allclose(out, ref, rtol=2e-4, atol=2e-4), f"mismatch vs reference, max|err|={max_err}"

    print("KERNEL_OK")
</pallas_src>

<mosaic_0001>
module attributes {stable_mosaic.version = 11 : i64} {
  func.func @kernel(%arg0: i32, %arg1: memref<1x72x128xf32, #tpu.memory_space<vmem>>, %arg2: memref<1032x128xf32, #tpu.memory_space<vmem>>, %arg3: memref<1x8x128xf32, #tpu.memory_space<vmem>>) attributes {dimension_semantics = [#tpu.dimension_semantics<parallel>], iteration_bounds = array<i64: 8>, scalar_prefetch = 0 : i64, scratch_operands = 0 : i64, tpu.core_type = #tpu.core_type<tc>, window_params = [{transform_indices = @transform_0, window_bounds = array<i64: 1, 72, 128>}, {pipeline_mode = #tpu.pipeline_mode<synchronous>, transform_indices = @transform_1, window_bounds = array<i64: 1032, 128>}, {transform_indices = @transform_2, window_bounds = array<i64: 1, 8, 128>}]} {
    %c0 = arith.constant 0 : index
    %c0_0 = arith.constant 0 : index
    %c0_1 = arith.constant 0 : index
    %0 = vector.load %arg1[%c0, %c0_0, %c0_1] : memref<1x72x128xf32, #tpu.memory_space<vmem>>, vector<1x72x128xf32>
    %1 = vector.shape_cast %0 : vector<1x72x128xf32> to vector<72x128xf32>
    %2 = vector.extract_strided_slice %1 {offsets = [0, 0], sizes = [8, 128], strides = [1, 1]} : vector<72x128xf32> to vector<8x128xf32>
    %c0_2 = arith.constant 0 : index
    %c0_3 = arith.constant 0 : index
    %3 = vector.load %arg2[%c0_2, %c0_3] : memref<1032x128xf32, #tpu.memory_space<vmem>>, vector<128x128xf32>
    %cst = arith.constant dense<0.000000e+00> : vector<8x128xf32>
    %4 = tpu.matmul %2, %3, %cst {dimension_numbers = #tpu.dot_dimension_numbers<[1], [0], [0], [1], [0, 0, 1, 1], [], []>} : vector<8x128xf32>, vector<128x128xf32>, vector<8x128xf32> -> vector<8x128xf32>
    %5 = vector.extract_strided_slice %1 {offsets = [8, 0], sizes = [48, 128], strides = [1, 1]} : vector<72x128xf32> to vector<48x128xf32>
    %c128 = arith.constant 128 : index
    %c0_4 = arith.constant 0 : index
    %6 = vector.load %arg2[%c128, %c0_4] : memref<1032x128xf32, #tpu.memory_space<vmem>>, vector<128x128xf32>
    %cst_5 = arith.constant dense<0.000000e+00> : vector<48x128xf32>
    %7 = tpu.matmul %5, %6, %cst_5 {dimension_numbers = #tpu.dot_dimension_numbers<[1], [0], [0], [1], [0, 0, 1, 1], [], []>} : vector<48x128xf32>, vector<128x128xf32>, vector<48x128xf32> -> vector<48x128xf32>
    %8 = vector.extract_strided_slice %1 {offsets = [56, 0], sizes = [16, 128], strides = [1, 1]} : vector<72x128xf32> to vector<16x128xf32>
    %c256 = arith.constant 256 : index
    %c0_6 = arith.constant 0 : index
    %9 = vector.load %arg2[%c256, %c0_6] : memref<1032x128xf32, #tpu.memory_space<vmem>>, vector<128x128xf32>
    %cst_7 = arith.constant dense<0.000000e+00> : vector<16x128xf32>
    %10 = tpu.matmul %8, %9, %cst_7 {dimension_numbers = #tpu.dot_dimension_numbers<[1], [0], [0], [1], [0, 0, 1, 1], [], []>} : vector<16x128xf32>, vector<128x128xf32>, vector<16x128xf32> -> vector<16x128xf32>
    %11 = tpu.iota {dimensions = array<i32: 1>} : vector<8x128xi32>
    %c16_i32 = arith.constant 16 : i32
    %12 = vector.broadcast %c16_i32 : i32 to vector<8x128xi32>
    %13 = arith.cmpi slt, %11, %12 : vector<8x128xi32>
    %cst_8 = arith.constant -1.000000e+30 : f32
    %14 = vector.broadcast %cst_8 : f32 to vector<8x128xf32>
    %15 = arith.select %13, %4, %14 : vector<8x128xi1>, vector<8x128xf32>
    %cst_9 = arith.constant dense<0xFF800000> : vector<8xf32>
    %16 = vector.multi_reduction <maximumf>, %15, %cst_9 [1] : vector<8x128xf32> to vector<8xf32>
    %17 = vector.shape_cast %16 : vector<8xf32> to vector<8x1xf32>
    %18 = vector.broadcast %17 : vector<8x1xf32> to vector<8x128xf32>
    %19 = arith.subf %15, %18 : vector<8x128xf32>
    %20 = math.exp %19 : vector<8x128xf32>
    %cst_10 = arith.constant dense<0.000000e+00> : vector<8xf32>
    %21 = vector.multi_reduction <add>, %20, %cst_10 [1] : vector<8x128xf32> to vector<8xf32>
    %22 = vector.shape_cast %21 : vector<8xf32> to vector<8x1xf32>
    %23 = math.log %22 : vector<8x1xf32>
    %24 = arith.addf %23, %17 : vector<8x1xf32>
    %25 = vector.broadcast %24 : vector<8x1xf32> to vector<8x128xf32>
    %26 = arith.subf %4, %25 : vector<8x128xf32>
    %cst_11 = arith.constant 0.000000e+00 : f32
    %27 = vector.broadcast %cst_11 : f32 to vector<8x128xf32>
    %28 = arith.select %13, %26, %27 : vector<8x128xi1>, vector<8x128xf32>
    %29 = tpu.iota {dimensions = array<i32: 1>} : vector<48x128xi32>
    %c8_i32 = arith.constant 8 : i32
    %30 = vector.broadcast %c8_i32 : i32 to vector<48x128xi32>
    %31 = arith.cmpi slt, %29, %30 : vector<48x128xi32>
    %cst_12 = arith.constant -1.000000e+30 : f32
    %32 = vector.broadcast %cst_12 : f32 to vector<48x128xf32>
    %33 = arith.select %31, %7, %32 : vector<48x128xi1>, vector<48x128xf32>
    %cst_13 = arith.constant dense<0xFF800000> : vector<48xf32>
    %34 = vector.multi_reduction <maximumf>, %33, %cst_13 [1] : vector<48x128xf32> to vector<48xf32>
    %35 = vector.shape_cast %34 : vector<48xf32> to vector<48x1xf32>
    %36 = vector.broadcast %35 : vector<48x1xf32> to vector<48x128xf32>
    %37 = arith.subf %33, %36 : vector<48x128xf32>
    %38 = math.exp %37 : vector<48x128xf32>
    %cst_14 = arith.constant dense<0.000000e+00> : vector<48xf32>
    %39 = vector.multi_reduction <add>, %38, %cst_14 [1] : vector<48x128xf32> to vector<48xf32>
    %40 = vector.shape_cast %39 : vector<48xf32> to vector<48x1xf32>
    %41 = math.log %40 : vector<48x1xf32>
    %42 = arith.addf %41, %35 : vector<48x1xf32>
    %43 = vector.broadcast %42 : vector<48x1xf32> to vector<48x128xf32>
    %44 = arith.subf %7, %43 : vector<48x128xf32>
    %cst_15 = arith.constant 0.000000e+00 : f32
    %45 = vector.broadcast %cst_15 : f32 to vector<48x128xf32>
    %46 = arith.select %31, %44, %45 : vector<48x128xi1>, vector<48x128xf32>
    %47 = tpu.iota {dimensions = array<i32: 1>} : vector<16x128xi32>
    %c8_i32_16 = arith.constant 8 : i32
    %48 = vector.broadcast %c8_i32_16 : i32 to vector<16x128xi32>
    %49 = arith.cmpi slt, %47, %48 : vector<16x128xi32>
    %cst_17 = arith.constant -1.000000e+30 : f32
    %50 = vector.broadcast %cst_17 : f32 to vector<16x128xf32>
    %51 = arith.select %49, %10, %50 : vector<16x128xi1>, vector<16x128xf32>
    %cst_18 = arith.constant dense<0xFF800000> : vector<16xf32>
    %52 = vector.multi_reduction <maximumf>, %51, %cst_18 [1] : vector<16x128xf32> to vector<16xf32>
    %53 = vector.shape_cast %52 : vector<16xf32> to vector<16x1xf32>
    %54 = vector.broadcast %53 : vector<16x1xf32> to vector<16x128xf32>
    %55 = arith.subf %51, %54 : vector<16x128xf32>
    %56 = math.exp %55 : vector<16x128xf32>
    %cst_19 = arith.constant dense<0.000000e+00> : vector<16xf32>
    %57 = vector.multi_reduction <add>, %56, %cst_19 [1] : vector<16x128xf32> to vector<16xf32>
    %58 = vector.shape_cast %57 : vector<16xf32> to vector<16x1xf32>
    %59 = math.log %58 : vector<16x1xf32>
    %60 = arith.addf %59, %53 : vector<16x1xf32>
    %61 = vector.broadcast %60 : vector<16x1xf32> to vector<16x128xf32>
    %62 = arith.subf %10, %61 : vector<16x128xf32>
    %cst_20 = arith.constant 0.000000e+00 : f32
    %63 = vector.broadcast %cst_20 : f32 to vector<16x128xf32>
    %64 = arith.select %49, %62, %63 : vector<16x128xi1>, vector<16x128xf32>
    %65 = tpu.iota {dimensions = array<i32: 1>} : vector<1x8xi32>
    %c0_i32 = arith.constant 0 : i32
    %66 = vector.broadcast %c0_i32 : i32 to vector<1x8xi32>
    %67 = arith.cmpi sge, %65, %66 : vector<1x8xi32>
    %c8_i32_21 = arith.constant 8 : i32
    %68 = vector.broadcast %c8_i32_21 : i32 to vector<1x8xi32>
    %69 = arith.cmpi slt, %65, %68 : vector<1x8xi32>
    %70 = arith.andi %67, %69 : vector<1x8xi1>
    %cst_22 = arith.constant 1.250000e-01 : f32
    %cst_23 = arith.constant 0.000000e+00 : f32
    %71 = vector.broadcast %cst_22 : f32 to vector<1x8xf32>
    %72 = vector.broadcast %cst_23 : f32 to vector<1x8xf32>
    %73 = arith.select %70, %71, %72 : vector<1x8xi1>, vector<1x8xf32>
    %cst_24 = arith.constant dense<0.000000e+00> : vector<1x128xf32>
    %74 = tpu.matmul %73, %28, %cst_24 {dimension_numbers = #tpu.dot_dimension_numbers<[1], [0], [0], [1], [0, 0, 1, 1], [], []>} : vector<1x8xf32>, vector<8x128xf32>, vector<1x128xf32> -> vector<1x128xf32>
    %75 = tpu.iota {dimensions = array<i32: 1>} : vector<1x48xi32>
    %c0_i32_25 = arith.constant 0 : i32
    %76 = vector.broadcast %c0_i32_25 : i32 to vector<1x48xi32>
    %77 = arith.cmpi sge, %75, %76 : vector<1x48xi32>
    %c20_i32 = arith.constant 20 : i32
    %78 = vector.broadcast %c20_i32 : i32 to vector<1x48xi32>
    %79 = arith.cmpi slt, %75, %78 : vector<1x48xi32>
    %80 = arith.andi %77, %79 : vector<1x48xi1>
    %cst_26 = arith.constant 5.000000e-02 : f32
    %cst_27 = arith.constant 0.000000e+00 : f32
    %81 = vector.broadcast %cst_26 : f32 to vector<1x48xf32>
    %82 = vector.broadcast %cst_27 : f32 to vector<1x48xf32>
    %83 = arith.select %80, %81, %82 : vector<1x48xi1>, vector<1x48xf32>
    %cst_28 = arith.constant dense<0.000000e+00> : vector<1x128xf32>
    %84 = tpu.matmul %83, %46, %cst_28 {dimension_numbers = #tpu.dot_dimension_numbers<[1], [0], [0], [1], [0, 0, 1, 1], [], []>} : vector<1x48xf32>, vector<48x128xf32>, vector<1x128xf32> -> vector<1x128xf32>
    %85 = tpu.iota {dimensions = array<i32: 1>} : vector<1x48xi32>
    %c24_i32 = arith.constant 24 : i32
    %86 = vector.broadcast %c24_i32 : i32 to vector<1x48xi32>
    %87 = arith.cmpi sge, %85, %86 : vector<1x48xi32>
    %c44_i32 = arith.constant 44 : i32
    %88 = vector.broadcast %c44_i32 : i32 to vector<1x48xi32>
    %89 = arith.cmpi slt, %85, %88 : vector<1x48xi32>
    %90 = arith.andi %87, %89 : vector<1x48xi1>
    %cst_29 = arith.constant 5.000000e-02 : f32
    %cst_30 = arith.constant 0.000000e+00 : f32
    %91 = vector.broadcast %cst_29 : f32 to vector<1x48xf32>
    %92 = vector.broadcast %cst_30 : f32 to vector<1x48xf32>
    %93 = arith.select %90, %91, %92 : vector<1x48xi1>, vector<1x48xf32>
    %cst_31 = arith.constant dense<0.000000e+00> : vector<1x128xf32>
    %94 = tpu.matmul %93, %46, %cst_31 {dimension_numbers = #tpu.dot_dimension_numbers<[1], [0], [0], [1], [0, 0, 1, 1], [], []>} : vector<1x48xf32>, vector<48x128xf32>, vector<1x128xf32> -> vector<1x128xf32>
    %95 = tpu.iota {dimensions = array<i32: 1>} : vector<1x16xi32>
    %c0_i32_32 = arith.constant 0 : i32
    %96 = vector.broadcast %c0_i32_32 : i32 to vector<1x16xi32>
    %97 = arith.cmpi sge, %95, %96 : vector<1x16xi32>
    %c6_i32 = arith.constant 6 : i32
    %98 = vector.broadcast %c6_i32 : i32 to vector<1x16xi32>
    %99 = arith.cmpi slt, %95, %98 : vector<1x16xi32>
    %100 = arith.andi %97, %99 : vector<1x16xi1>
    %cst_33 = arith.constant 0.166666672 : f32
    %cst_34 = arith.constant 0.000000e+00 : f32
    %101 = vector.broadcast %cst_33 : f32 to vector<1x16xf32>
    %102 = vector.broadcast %cst_34 : f32 to vector<1x16xf32>
    %103 = arith.select %100, %101, %102 : vector<1x16xi1>, vector<1x16xf32>
    %cst_35 = arith.constant dense<0.000000e+00> : vector<1x128xf32>
    %104 = tpu.matmul %103, %64, %cst_35 {dimension_numbers = #tpu.dot_dimension_numbers<[1], [0], [0], [1], [0, 0, 1, 1], [], []>} : vector<1x16xf32>, vector<16x128xf32>, vector<1x128xf32> -> vector<1x128xf32>
    %105 = tpu.iota {dimensions = array<i32: 1>} : vector<1x16xi32>
    %c8_i32_36 = arith.constant 8 : i32
    %106 = vector.broadcast %c8_i32_36 : i32 to vector<1x16xi32>
    %107 = arith.cmpi sge, %105, %106 : vector<1x16xi32>
    %c14_i32 = arith.constant 14 : i32
    %108 = vector.broadcast %c14_i32 : i32 to vector<1x16xi32>
    %109 = arith.cmpi slt, %105, %108 : vector<1x16xi32>
    %110 = arith.andi %107, %109 : vector<1x16xi1>
    %cst_37 = arith.constant 0.166666672 : f32
    %cst_38 = arith.constant 0.000000e+00 : f32
    %111 = vector.broadcast %cst_37 : f32 to vector<1x16xf32>
    %112 = vector.broadcast %cst_38 : f32 to vector<1x16xf32>
    %113 = arith.select %110, %111, %112 : vector<1x16xi1>, vector<1x16xf32>
    %cst_39 = arith.constant dense<0.000000e+00> : vector<1x128xf32>
    %114 = tpu.matmul %113, %64, %cst_39 {dimension_numbers = #tpu.dot_dimension_numbers<[1], [0], [0], [1], [0, 0, 1, 1], [], []>} : vector<1x16xf32>, vector<16x128xf32>, vector<1x128xf32> -> vector<1x128xf32>
    %c384 = arith.constant 384 : index
    %c0_40 = arith.constant 0 : index
    %115 = vector.load %arg2[%c384, %c0_40] : memref<1032x128xf32, #tpu.memory_space<vmem>>, vector<128x128xf32>
    %cst_41 = arith.constant dense<0.000000e+00> : vector<1x128xf32>
    %116 = tpu.matmul %74, %115, %cst_41 {dimension_numbers = #tpu.dot_dimension_numbers<[1], [0], [0], [1], [0, 0, 1, 1], [], []>} : vector<1x128xf32>, vector<128x128xf32>, vector<1x128xf32> -> vector<1x128xf32>
    %c512 = arith.constant 512 : index
    %c0_42 = arith.constant 0 : index
    %117 = vector.load %arg2[%c512, %c0_42] : memref<1032x128xf32, #tpu.memory_space<vmem>>, vector<128x128xf32>
    %cst_43 = arith.constant dense<0.000000e+00> : vector<1x128xf32>
    %118 = tpu.matmul %84, %117, %cst_43 {dimension_numbers = #tpu.dot_dimension_numbers<[1], [0], [0], [1], [0, 0, 1, 1], [], []>} : vector<1x128xf32>, vector<128x128xf32>, vector<1x128xf32> -> vector<1x128xf32>
    %119 = arith.addf %116, %118 : vector<1x128xf32>
    %c640 = arith.constant 640 : index
    %c0_44 = arith.constant 0 : index
    %120 = vector.load %arg2[%c640, %c0_44] : memref<1032x128xf32, #tpu.memory_space<vmem>>, vector<128x128xf32>
    %cst_45 = arith.constant dense<0.000000e+00> : vector<1x128xf32>
    %121 = tpu.matmul %94, %120, %cst_45 {dimension_numbers = #tpu.dot_dimension_numbers<[1], [0], [0], [1], [0, 0, 1, 1], [], []>} : vector<1x128xf32>, vector<128x128xf32>, vector<1x128xf32> -> vector<1x128xf32>
    %122 = arith.addf %119, %121 : vector<1x128xf32>
    %c768 = arith.constant 768 : index
    %c0_46 = arith.constant 0 : index
    %123 = vector.load %arg2[%c768, %c0_46] : memref<1032x128xf32, #tpu.memory_space<vmem>>, vector<128x128xf32>
    %cst_47 = arith.constant dense<0.000000e+00> : vector<1x128xf32>
    %124 = tpu.matmul %104, %123, %cst_47 {dimension_numbers = #tpu.dot_dimension_numbers<[1], [0], [0], [1], [0, 0, 1, 1], [], []>} : vector<1x128xf32>, vector<128x128xf32>, vector<1x128xf32> -> vector<1x128xf32>
    %125 = arith.addf %122, %124 : vector<1x128xf32>
    %c896 = arith.constant 896 : index
    %c0_48 = arith.constant 0 : index
    %126 = vector.load %arg2[%c896, %c0_48] : memref<1032x128xf32, #tpu.memory_space<vmem>>, vector<128x128xf32>
    %cst_49 = arith.constant dense<0.000000e+00> : vector<1x128xf32>
    %127 = tpu.matmul %114, %126, %cst_49 {dimension_numbers = #tpu.dot_dimension_numbers<[1], [0], [0], [1], [0, 0, 1, 1], [], []>} : vector<1x128xf32>, vector<128x128xf32>, vector<1x128xf32> -> vector<1x128xf32>
    %128 = arith.addf %125, %127 : vector<1x128xf32>
    %c1024 = arith.constant 1024 : index
    %c0_50 = arith.constant 0 : index
    %129 = vector.load %arg2[%c1024, %c0_50] : memref<1032x128xf32, #tpu.memory_space<vmem>>, vector<1x128xf32>
    %130 = arith.addf %128, %129 : vector<1x128xf32>
    %cst_51 = arith.constant 0.000000e+00 : f32
    %131 = vector.broadcast %cst_51 : f32 to vector<1x128xf32>
    %132 = arith.maximumf %130, %131 : vector<1x128xf32>
    %133 = vector.shape_cast %132 : vector<1x128xf32> to vector<1x128xf32>
    %134 = vector.broadcast %133 : vector<1x128xf32> to vector<8x128xf32>
    %c0_52 = arith.constant 0 : index
    %c0_53 = arith.constant 0 : index
    %c0_54 = arith.constant 0 : index
    %135 = vector.load %arg3[%c0_52, %c0_53, %c0_54] : memref<1x8x128xf32, #tpu.memory_space<vmem>>, vector<1x8x128xf32>
    %136 = vector.shape_cast %135 : vector<1x8x128xf32> to vector<8x128xf32>
    %137 = vector.shape_cast %134 : vector<8x128xf32> to vector<1x8x128xf32>
    tpu.vector_store %arg3[%c0_52, %c0_53, %c0_54], %137 {strides = array<i32>} : memref<1x8x128xf32, #tpu.memory_space<vmem>>, vector<1x8x128xf32>,
    return
  }
  func.func @transform_0(%arg0: i32) -> (i32, i32, i32) {
    %c0_i32 = arith.constant 0 : i32
    %c0_i32_0 = arith.constant 0 : i32
    %c0_i32_1 = arith.constant 0 : i32
    return %arg0, %c0_i32, %c0_i32_0 : i32, i32, i32
  }
  func.func @transform_1(%arg0: i32) -> (i32, i32) {
    %c0_i32 = arith.constant 0 : i32
    %c0_i32_0 = arith.constant 0 : i32
    %c0_i32_1 = arith.constant 0 : i32
    return %c0_i32, %c0_i32_0 : i32, i32
  }
  func.func @transform_2(%arg0: i32) -> (i32, i32, i32) {
    %c0_i32 = arith.constant 0 : i32
    %c0_i32_0 = arith.constant 0 : i32
    %c0_i32_1 = arith.constant 0 : i32
    return %arg0, %c0_i32, %c0_i32_0 : i32, i32, i32
  }
}

</mosaic_0001>

<llo_original>
// kernel: nn_v2_forward.1
$region0: #{nn_v2_forward.1}
  #allocation0 [shape = 'u32[]', space=smem, size = 0x4, offset = 0x4, fixed_abs, tag = 'smem constant byte address 0x4 - core index']
  #allocation1 [shape = 'u32[72,128]{1,0:T(1,128)}', space=vmem, size = 0x9000, scoped, tag = 'internal scratch']
  %s0 = inlined_call_operand.vmem [shape: f32[8,72,128], index: 0, kind: input, shape index: {}]
  %s1 = inlined_call_operand.vmem [shape: f32[1032,128], index: 1, kind: input, shape index: {}]
  %s2 = inlined_call_operand.vmem [shape: f32[8,8,128], index: 2, kind: output, shape index: {}]
  %s3 = sld [smem:[#allocation0]]
  $region41: #{nn_v2_forward.1} parent=0
    _
  %s5 = ssub.s32 1, %s3
  %s6 = scalar_select 0, %s5, %s3
  loop: start=0, step=1, limit=10
  $region2: #{nn_v2_forward.1} parent=0 // loop_pre_header
    _
  $region3: #{nn_v2_forward.1} parent=0 // loop_header
    %s8 = sphi 0, %s12
    %p9 = scmp.ge.s32.totalorder %s8, 10
    %s18 = sphi 0, %s20
    %s21 = sphi 0, %s18
    %s22 = sphi 0, %s21
    %s38 = sphi 0, %s22
    %s42 = sphi 0, %s42
    %s44 = sphi 0, %s42
    %s45 = sphi 0, %s44
    %s59 = sphi 0, %s45
    %s65 = sphi 0, %s67
    %s68 = sphi 0, %s65
    %s69 = sphi 0, %s68
    %s85 = sphi 0, %s69
  $region4: #{nn_v2_forward.1} parent=0 // loop_header_branch
    %11 = sbr.rel (%p9) target = $region8
  $region5: #{nn_v2_forward.1} parent=0 // loop_body
    %s13 = ssub.s32 %s8, 1
    %s14 = ssub.s32 %s8, 2
    %s15 = sadd.s32 %s8, 1
    %s16 = ssub.s32 %s8, %s15
    %p17 = scmp.eq.s32.totalorder %s16, 0
    %s19 = sadd.s32 %s18, 1
    %s20 = scalar_select %p17, %s18, %s19
    %p23 = pneg %p17
    %p24 = scmp.eq.s32.totalorder %s8, 7
    %p25 = por %p23, %p24
    %p26 = scmp.ne.s32.totalorder %s18, %s21
    %p27 = scmp.eq.s32.totalorder %s8, 0
    %p28 = por %p26, %p27
    %p29 = scmp.ne.s32.totalorder %s18, %s21
    %p30 = scmp.eq.s32.totalorder %s13, 7
    %p31 = por %p29, %p30
    %p32 = scmp.ne.s32.totalorder %s21, %s22
    %p33 = scmp.eq.s32.totalorder %s13, 0
    %p34 = por %p32, %p33
    %p35 = scmp.ne.s32.totalorder %s21, %s22
    %p36 = scmp.eq.s32.totalorder %s14, 7
    %p37 = por %p35, %p36
    %p39 = scmp.ne.s32.totalorder %s22, %s38
    %p40 = scmp.eq.s32.totalorder %s14, 0
    %p41 = por %p39, %p40
    %s43 = sadd.s32 %s42, 1
    %p46 = scmp.eq.s32.totalorder %s8, 7
    %p47 = scmp.ne.s32.totalorder %s42, %s44
    %p48 = scmp.eq.s32.totalorder %s8, 0
    %p49 = por %p47, %p48
    %p50 = scmp.ne.s32.totalorder %s42, %s44
    %p51 = scmp.eq.s32.totalorder %s13, 7
    %p52 = por %p50, %p51
    %p53 = scmp.ne.s32.totalorder %s44, %s45
    %p54 = scmp.eq.s32.totalorder %s13, 0
    %p55 = por %p53, %p54
    %p56 = scmp.ne.s32.totalorder %s44, %s45
    %p57 = scmp.eq.s32.totalorder %s14, 7
    %p58 = por %p56, %p57
    %p60 = scmp.ne.s32.totalorder %s45, %s59
    %p61 = scmp.eq.s32.totalorder %s14, 0
    %p62 = por %p60, %p61
    %s63 = ssub.s32 %s8, %s15
    %p64 = scmp.eq.s32.totalorder %s63, 0
    %s66 = sadd.s32 %s65, 1
    %s67 = scalar_select %p64, %s65, %s66
    %p70 = pneg %p64
    %p71 = scmp.eq.s32.totalorder %s8, 7
    %p72 = por %p70, %p71
    %p73 = scmp.ne.s32.totalorder %s65, %s68
    %p74 = scmp.eq.s32.totalorder %s8, 0
    %p75 = por %p73, %p74
    %p76 = scmp.ne.s32.totalorder %s65, %s68
    %p77 = scmp.eq.s32.totalorder %s13, 7
    %p78 = por %p76, %p77
    %p79 = scmp.ne.s32.totalorder %s68, %s69
    %p80 = scmp.eq.s32.totalorder %s13, 0
    %p81 = por %p79, %p80
    %p82 = scmp.ne.s32.totalorder %s68, %s69
    %p83 = scmp.eq.s32.totalorder %s14, 7
    %p84 = por %p82, %p83
    %p86 = scmp.ne.s32.totalorder %s69, %s85
    %p87 = scmp.eq.s32.totalorder %s14, 0
    %p88 = por %p86, %p87
    %p89 = scmp.le.s32.totalorder 1, %s8
    %p90 = scmp.lt.s32.totalorder %s8, 9
    %p91 = pnand %p89, %p90
    %p92 = pneg %p91
    // Predicated region
    $region9: #{nn_v2_forward.1} parent=5 // pred_check
      _
    $region10: #{nn_v2_forward.1} parent=5 // pred_check_branch
      %94 = sbr.rel (%p91) target = $region12
    $region11: #{nn_v2_forward.1} parent=5 // pred_region
      %s95 = ssub.s32 %s8, 1
      // Predicated region
      $region13: #{nn_v2_forward.1} parent=11 // pred_check
        %p96 = pneg %p55
      $region14: #{nn_v2_forward.1} parent=11 // pred_check_branch
        %98 = sbr.rel (%p96) target = $region16
      $region15: #{nn_v2_forward.1} parent=11 // pred_region
        _
      $region16: #{nn_v2_forward.1} parent=11 // pred_fallthru
        _
    $region12: #{nn_v2_forward.1} parent=5 // pred_fallthru
      _
    %p99 = scmp.lt.s32.totalorder %s8, 8
    // Predicated region
    $region17: #{nn_v2_forward.1} parent=5 // pred_check
      %p100 = pneg %p99
    $region18: #{nn_v2_forward.1} parent=5 // pred_check_branch
      %102 = sbr.rel (%p100) target = $region20
    $region19: #{nn_v2_forward.1} parent=5 // pred_region
      // Predicated region
      $region21: #{nn_v2_forward.1} parent=19 // pred_check
        %p103 = pneg %p28
      $region22: #{nn_v2_forward.1} parent=19 // pred_check_branch
        %105 = sbr.rel (%p103) target = $region24
      $region23: #{nn_v2_forward.1} parent=19 // pred_region
        %p106 = scmp.lt.s32.totalorder %s8, 7
        %s107 = scalar_select %p106, %s8, 7
        %s108 = smul.addr %s107, 9
        %s109 = smul.addr %s108, 8
        %s110 = scalar_lea.vmem %s0, %s109
      $region24: #{nn_v2_forward.1} parent=19 // pred_fallthru
        _
    $region20: #{nn_v2_forward.1} parent=5 // pred_fallthru
      _
    %p111 = scmp.le.s32.totalorder 1, %s8
    %p112 = scmp.lt.s32.totalorder %s8, 9
    %p113 = pnand %p111, %p112
    %p114 = pneg %p113
    // Predicated region
    $region25: #{nn_v2_forward.1} parent=5 // pred_check
      _
    $region26: #{nn_v2_forward.1} parent=5 // pred_check_branch
      %116 = sbr.rel (%p113) target = $region28
    $region27: #{nn_v2_forward.1} parent=5 // pred_region
      %s117 = ssub.s32 %s8, 1
      %p118 = scmp.lt.s32.totalorder %s13, 7
      %s119 = scalar_select %p118, %s13, 7
      %s120 = smul.addr %s119, 9
      %s121 = smul.addr %s120, 8
      %s122 = scalar_lea.vmem %s0, %s121
      %p123 = pneg %p34
      %p124 = pneg %p31
      %p125 = pneg %p55
      %p126 = pneg %p52
      %p127 = pneg %p81
      %p128 = pneg %p78
      %p129 = scmp.lt.s32.totalorder %s13, 7
      %s130 = scalar_select %p129, %s13, 7
      %s131 = smul.addr %s130, 8
      %s132 = scalar_lea.vmem %s2, %s131
      %p133 = scmp.lt.s32.totalorder %s13, 7
      %s134 = scalar_select %p133, %s13, 7
      %s135 = smul.addr %s134, 9
      %s136 = smul.addr %s135, 8
      %s137 = scalar_lea.vmem %s0, %s136
      %p138 = scmp.lt.s32.totalorder %s13, 7
      %s139 = scalar_select %p138, %s13, 7
      %s140 = smul.addr %s139, 8
      %s141 = scalar_lea.vmem %s2, %s140
      %v142 = vld [vmem:[%s137] sm:$0xff]
      %v143 = vld [vmem:[%s137 + $0x8] sm:$0xff]
      %v144 = vld [vmem:[%s137 + $0x10] sm:$0xff]
      %v145 = vld [vmem:[%s137 + $0x18] sm:$0xff]
      %v146 = vld [vmem:[%s137 + $0x20] sm:$0xff]
      %v147 = vld [vmem:[%s137 + $0x28] sm:$0xff]
      %v148 = vld [vmem:[%s137 + $0x30] sm:$0xff]
      %v149 = vld [vmem:[%s137 + $0x38] sm:$0xff]
      %v150 = vld [vmem:[%s137 + $0x40] sm:$0xff]
      %v151 = vld [vmem:[%s1] sm:$0xff]
      %v152 = vld [vmem:[%s1 + $0x8] sm:$0xff]
      %v153 = vld [vmem:[%s1 + $0x10] sm:$0xff]
      %v154 = vld [vmem:[%s1 + $0x18] sm:$0xff]
      %v155 = vld [vmem:[%s1 + $0x20] sm:$0xff]
      %v156 = vld [vmem:[%s1 + $0x28] sm:$0xff]
      %v157 = vld [vmem:[%s1 + $0x30] sm:$0xff]
      %v158 = vld [vmem:[%s1 + $0x38] sm:$0xff]
      %v159 = vld [vmem:[%s1 + $0x40] sm:$0xff]
      %v160 = vld [vmem:[%s1 + $0x48] sm:$0xff]
      %v161 = vld [vmem:[%s1 + $0x50] sm:$0xff]
      %v162 = vld [vmem:[%s1 + $0x58] sm:$0xff]
      %v163 = vld [vmem:[%s1 + $0x60] sm:$0xff]
      %v164 = vld [vmem:[%s1 + $0x68] sm:$0xff]
      %v165 = vld [vmem:[%s1 + $0x70] sm:$0xff]
      %v166 = vld [vmem:[%s1 + $0x78] sm:$0xff]
      %167 = vmatpush.msra.mxu0 %v166
      %168 = vmatpush.msra.mxu0 %v165
      %169 = vmatpush.msra.mxu0 %v164
      %170 = vmatpush.msra.mxu0 %v163
      %171 = vmatpush.msra.mxu0 %v162
      %172 = vmatpush.msra.mxu0 %v161
      %173 = vmatpush.msra.mxu0 %v160
      %174 = vmatpush.msra.mxu0 %v159
      %175 = vmatpush.msra.mxu0 %v158
      %176 = vmatpush.msra.mxu0 %v157
      %177 = vmatpush.msra.mxu0 %v156
      %178 = vmatpush.msra.mxu0 %v155
      %179 = vmatpush.msra.mxu0 %v154
      %180 = vmatpush.msra.mxu0 %v153
      %181 = vmatpush.msra.mxu0 %v152
      %182 = vmatpush.msra.mxu0 %v151
      %183 = vmatmul.f32.gmra.mxu0 %v142
      %v184 = vpop.f32.mrf.mxu0
      %v185 = vadd.f32 0.0, %v184
      %186 = vdwg.mxu0
      %v187 = vld [vmem:[%s1 + $0x80] sm:$0xff]
      %v188 = vld [vmem:[%s1 + $0x88] sm:$0xff]
      %v189 = vld [vmem:[%s1 + $0x90] sm:$0xff]
      %v190 = vld [vmem:[%s1 + $0x98] sm:$0xff]
      %v191 = vld [vmem:[%s1 + $0xa0] sm:$0xff]
      %v192 = vld [vmem:[%s1 + $0xa8] sm:$0xff]
      %v193 = vld [vmem:[%s1 + $0xb0] sm:$0xff]
      %v194 = vld [vmem:[%s1 + $0xb8] sm:$0xff]
      %v195 = vld [vmem:[%s1 + $0xc0] sm:$0xff]
      %v196 = vld [vmem:[%s1 + $0xc8] sm:$0xff]
      %v197 = vld [vmem:[%s1 + $0xd0] sm:$0xff]
      %v198 = vld [vmem:[%s1 + $0xd8] sm:$0xff]
      %v199 = vld [vmem:[%s1 + $0xe0] sm:$0xff]
      %v200 = vld [vmem:[%s1 + $0xe8] sm:$0xff]
      %v201 = vld [vmem:[%s1 + $0xf0] sm:$0xff]
      %v202 = vld [vmem:[%s1 + $0xf8] sm:$0xff]
      %203 = vmatpush.msra.mxu0 %v202
      %204 = vmatpush.msra.mxu0 %v201
      %205 = vmatpush.msra.mxu0 %v200
      %206 = vmatpush.msra.mxu0 %v199
      %207 = vmatpush.msra.mxu0 %v198
      %208 = vmatpush.msra.mxu0 %v197
      %209 = vmatpush.msra.mxu0 %v196
      %210 = vmatpush.msra.mxu0 %v195
      %211 = vmatpush.msra.mxu0 %v194
      %212 = vmatpush.msra.mxu0 %v193
      %213 = vmatpush.msra.mxu0 %v192
      %214 = vmatpush.msra.mxu0 %v191
      %215 = vmatpush.msra.mxu0 %v190
      %216 = vmatpush.msra.mxu0 %v189
      %217 = vmatpush.msra.mxu0 %v188
      %218 = vmatpush.msra.mxu0 %v187
      %219 = vmatmul.f32.gmra.mxu0 %v143
      %v220 = vpop.f32.mrf.mxu0
      %v221 = vadd.f32 0.0, %v220
      %222 = vmatmul.f32.gmra.mxu0 %v144
      %v223 = vpop.f32.mrf.mxu0
      %v224 = vadd.f32 0.0, %v223
      %225 = vmatmul.f32.gmra.mxu0 %v145
      %v226 = vpop.f32.mrf.mxu0
      %v227 = vadd.f32 0.0, %v226
      %228 = vmatmul.f32.gmra.mxu0 %v146
      %v229 = vpop.f32.mrf.mxu0
      %v230 = vadd.f32 0.0, %v229
      %231 = vmatmul.f32.gmra.mxu0 %v147
      %v232 = vpop.f32.mrf.mxu0
      %v233 = vadd.f32 0.0, %v232
      %234 = vmatmul.f32.gmra.mxu0 %v148
      %v235 = vpop.f32.mrf.mxu0
      %v236 = vadd.f32 0.0, %v235
      %237 = vdwg.mxu0
      %v238 = vld [vmem:[%s1 + $0x100] sm:$0xff]
      %v239 = vld [vmem:[%s1 + $0x108] sm:$0xff]
      %v240 = vld [vmem:[%s1 + $0x110] sm:$0xff]
      %v241 = vld [vmem:[%s1 + $0x118] sm:$0xff]
      %v242 = vld [vmem:[%s1 + $0x120] sm:$0xff]
      %v243 = vld [vmem:[%s1 + $0x128] sm:$0xff]
      %v244 = vld [vmem:[%s1 + $0x130] sm:$0xff]
      %v245 = vld [vmem:[%s1 + $0x138] sm:$0xff]
      %v246 = vld [vmem:[%s1 + $0x140] sm:$0xff]
      %v247 = vld [vmem:[%s1 + $0x148] sm:$0xff]
      %v248 = vld [vmem:[%s1 + $0x150] sm:$0xff]
      %v249 = vld [vmem:[%s1 + $0x158] sm:$0xff]
      %v250 = vld [vmem:[%s1 + $0x160] sm:$0xff]
      %v251 = vld [vmem:[%s1 + $0x168] sm:$0xff]
      %v252 = vld [vmem:[%s1 + $0x170] sm:$0xff]
      %v253 = vld [vmem:[%s1 + $0x178] sm:$0xff]
      %254 = vmatpush.msra.mxu0 %v253
      %255 = vmatpush.msra.mxu0 %v252
      %256 = vmatpush.msra.mxu0 %v251
      %257 = vmatpush.msra.mxu0 %v250
      %258 = vmatpush.msra.mxu0 %v249
      %259 = vmatpush.msra.mxu0 %v248
      %260 = vmatpush.msra.mxu0 %v247
      %261 = vmatpush.msra.mxu0 %v246
      %262 = vmatpush.msra.mxu0 %v245
      %263 = vmatpush.msra.mxu0 %v244
      %264 = vmatpush.msra.mxu0 %v243
      %265 = vmatpush.msra.mxu0 %v242
      %266 = vmatpush.msra.mxu0 %v241
      %267 = vmatpush.msra.mxu0 %v240
      %268 = vmatpush.msra.mxu0 %v239
      %269 = vmatpush.msra.mxu0 %v238
      %270 = vmatmul.f32.gmra.mxu0 %v149
      %v271 = vpop.f32.mrf.mxu0
      %v272 = vadd.f32 0.0, %v271
      %273 = vmatmul.f32.gmra.mxu0 %v150
      %v274 = vpop.f32.mrf.mxu0
      %v275 = vadd.f32 0.0, %v274
      %276 = vdwg.mxu0
      %v277 = vlaneseq
      %v278 = vand.u32 %v277, 127
      %vm279 = vcmp.lt.s32.totalorder %v278, 16
      %v280 = vsel %vm279, %v185, -1e+30
      %281 = vmax.xlane.f32.xlu0 %v280
      %v282 = vpop.xlane.xlu0 %281
      %v283 = vsub.f32 %v280, %v282
      %v284 = vmul.f32 %v283, 1.442695
      %v285 = vpow.pop %v284
      %286 = vadd.xlane.f32.xlu0 %v285
      %v287 = vpop.xlane.xlu0 %286
      %v288 = vlog2.pop %v287
      %v289 = vmul.f32 %v288, 0.6931472
      %v290 = vadd.f32 %v289, %v282
      %v291 = vsub.f32 %v185, %v290
      %v292 = vsel %vm279, %v291, 0.0
      %vm293 = vcmp.lt.s32.totalorder %v278, 8
      %v294 = vsel %vm293, %v221, -1e+30
      %v295 = vsel %vm293, %v224, -1e+30
      %v296 = vsel %vm293, %v227, -1e+30
      %v297 = vsel %vm293, %v230, -1e+30
      %v298 = vsel %vm293, %v233, -1e+30
      %v299 = vsel %vm293, %v236, -1e+30
      %300 = vmax.xlane.f32.xlu0 %v294
      %v301 = vpop.xlane.xlu0 %300
      %302 = vmax.xlane.f32.xlu0 %v295
      %v303 = vpop.xlane.xlu0 %302
      %304 = vmax.xlane.f32.xlu0 %v296
      %v305 = vpop.xlane.xlu0 %304
      %306 = vmax.xlane.f32.xlu0 %v297
      %v307 = vpop.xlane.xlu0 %306
      %308 = vmax.xlane.f32.xlu0 %v298
      %v309 = vpop.xlane.xlu0 %308
      %310 = vmax.xlane.f32.xlu0 %v299
      %v311 = vpop.xlane.xlu0 %310
      %v312 = vsub.f32 %v294, %v301
      %v313 = vsub.f32 %v295, %v303
      %v314 = vsub.f32 %v296, %v305
      %v315 = vsub.f32 %v297, %v307
      %v316 = vsub.f32 %v298, %v309
      %v317 = vsub.f32 %v299, %v311
      %v318 = vmul.f32 %v312, 1.442695
      %v319 = vpow.pop %v318
      %v320 = vmul.f32 %v313, 1.442695
      %v321 = vpow.pop %v320
      %v322 = vmul.f32 %v314, 1.442695
      %v323 = vpow.pop %v322
      %v324 = vmul.f32 %v315, 1.442695
      %v325 = vpow.pop %v324
      %v326 = vmul.f32 %v316, 1.442695
      %v327 = vpow.pop %v326
      %v328 = vmul.f32 %v317, 1.442695
      %v329 = vpow.pop %v328
      %330 = vadd.xlane.f32.xlu0 %v319
      %v331 = vpop.xlane.xlu0 %330
      %332 = vadd.xlane.f32.xlu0 %v321
      %v333 = vpop.xlane.xlu0 %332
      %334 = vadd.xlane.f32.xlu0 %v323
      %v335 = vpop.xlane.xlu0 %334
      %336 = vadd.xlane.f32.xlu0 %v325
      %v337 = vpop.xlane.xlu0 %336
      %338 = vadd.xlane.f32.xlu0 %v327
      %v339 = vpop.xlane.xlu0 %338
      %340 = vadd.xlane.f32.xlu0 %v329
      %v341 = vpop.xlane.xlu0 %340
      %v342 = vlog2.pop %v331
      %v343 = vmul.f32 %v342, 0.6931472
      %v344 = vlog2.pop %v333
      %v345 = vmul.f32 %v344, 0.6931472
      %v346 = vlog2.pop %v335
      %v347 = vmul.f32 %v346, 0.6931472
      %v348 = vlog2.pop %v337
      %v349 = vmul.f32 %v348, 0.6931472
      %v350 = vlog2.pop %v339
      %v351 = vmul.f32 %v350, 0.6931472
      %v352 = vlog2.pop %v341
      %v353 = vmul.f32 %v352, 0.6931472
      %v354 = vadd.f32 %v343, %v301
      %v355 = vadd.f32 %v345, %v303
      %v356 = vadd.f32 %v347, %v305
      %v357 = vadd.f32 %v349, %v307
      %v358 = vadd.f32 %v351, %v309
      %v359 = vadd.f32 %v353, %v311
      %v360 = vsub.f32 %v221, %v354
      %v361 = vsub.f32 %v224, %v355
      %v362 = vsub.f32 %v227, %v356
      %v363 = vsub.f32 %v230, %v357
      %v364 = vsub.f32 %v233, %v358
      %v365 = vsub.f32 %v236, %v359
      %v366 = vsel %vm293, %v360, 0.0
      %v367 = vsel %vm293, %v361, 0.0
      %v368 = vsel %vm293, %v362, 0.0
      %v369 = vsel %vm293, %v363, 0.0
      %v370 = vsel %vm293, %v364, 0.0
      %v371 = vsel %vm293, %v365, 0.0
      %v372 = vsel %vm293, %v272, -1e+30
      %v373 = vsel %vm293, %v275, -1e+30
      %374 = vmax.xlane.f32.xlu0 %v372
      %v375 = vpop.xlane.xlu0 %374
      %376 = vmax.xlane.f32.xlu0 %v373
      %v377 = vpop.xlane.xlu0 %376
      %v378 = vsub.f32 %v372, %v375
      %v379 = vsub.f32 %v373, %v377
      %v380 = vmul.f32 %v378, 1.442695
      %v381 = vpow.pop %v380
      %v382 = vmul.f32 %v379, 1.442695
      %v383 = vpow.pop %v382
      %384 = vadd.xlane.f32.xlu0 %v381
      %v385 = vpop.xlane.xlu0 %384
      %386 = vadd.xlane.f32.xlu0 %v383
      %v387 = vpop.xlane.xlu0 %386
      %v388 = vlog2.pop %v385
      %v389 = vmul.f32 %v388, 0.6931472
      %v390 = vlog2.pop %v387
      %v391 = vmul.f32 %v390, 0.6931472
      %v392 = vadd.f32 %v389, %v375
      %v393 = vadd.f32 %v391, %v377
      %v394 = vsub.f32 %v272, %v392
      %v395 = vsub.f32 %v275, %v393
      %v396 = vsel %vm293, %v394, 0.0
      %v397 = vsel %vm293, %v395, 0.0
      %vm398 = vcmp.ge.s32.totalorder %v278, 0
      %vm399 = vmand %vm398, %vm293
      %v400 = vsel %vm399, 0.125, 0.0
      %vm401 = vcmask 64512
      %v403 = vsel %vm401, %v400, 0
      %405 = vmatpush.msra.mxu0 0.0
      %406 = vmatpush.msra.mxu0 0.0
      %407 = vmatpush.msra.mxu0 0.0
      %408 = vmatpush.msra.mxu0 0.0
      %409 = vmatpush.msra.mxu0 0.0
      %410 = vmatpush.msra.mxu0 0.0
      %411 = vmatpush.msra.mxu0 0.0
      %412 = vmatpush.msra.mxu0 0.0
      %413 = vmatpush.msra.mxu0 0.0
      %414 = vmatpush.msra.mxu0 0.0
      %415 = vmatpush.msra.mxu0 0.0
      %416 = vmatpush.msra.mxu0 0.0
      %417 = vmatpush.msra.mxu0 0.0
      %418 = vmatpush.msra.mxu0 0.0
      %419 = vmatpush.msra.mxu0 0.0
      %420 = vmatpush.msra.mxu0 %v292
      %421 = vmatmul.f32.gmra.mxu0 %v403
      %v422 = vpop.f32.mrf.mxu0
      %v423 = vadd.f32 0.0, %v422
      %424 = vdwg.mxu0
      %vm425 = vcmp.lt.s32.totalorder %v278, 20
      %vm426 = vmand %vm398, %vm425
      %v427 = vsel %vm426, 0.05, 0.0
      %vm428 = vcmask 392192
      %v430 = vsel %vm428, %v427, 0
      %432 = vmatpush.msra.mxu0 0.0
      %433 = vmatpush.msra.mxu0 0.0
      %434 = vmatpush.msra.mxu0 0.0
      %435 = vmatpush.msra.mxu0 0.0
      %436 = vmatpush.msra.mxu0 0.0
      %437 = vmatpush.msra.mxu0 0.0
      %438 = vmatpush.msra.mxu0 0.0
      %439 = vmatpush.msra.mxu0 0.0
      %440 = vmatpush.msra.mxu0 0.0
      %441 = vmatpush.msra.mxu0 0.0
      %442 = vmatpush.msra.mxu0 %v371
      %443 = vmatpush.msra.mxu0 %v370
      %444 = vmatpush.msra.mxu0 %v369
      %445 = vmatpush.msra.mxu0 %v368
      %446 = vmatpush.msra.mxu0 %v367
      %447 = vmatpush.msra.mxu0 %v366
      %448 = vmatmul.f32.gmra.mxu0 %v430
      %v449 = vpop.f32.mrf.mxu0
      %v450 = vadd.f32 0.0, %v449
      %451 = vdwg.mxu0
      %vm452 = vcmp.ge.s32.totalorder %v278, 24
      %vm453 = vcmp.lt.s32.totalorder %v278, 44
      %vm454 = vmand %vm452, %vm453
      %v455 = vsel %vm454, 0.05, 0.0
      %v457 = vsel %vm428, %v455, 0
      %459 = vmatpush.msra.mxu0 0.0
      %460 = vmatpush.msra.mxu0 0.0
      %461 = vmatpush.msra.mxu0 0.0
      %462 = vmatpush.msra.mxu0 0.0
      %463 = vmatpush.msra.mxu0 0.0
      %464 = vmatpush.msra.mxu0 0.0
      %465 = vmatpush.msra.mxu0 0.0
      %466 = vmatpush.msra.mxu0 0.0
      %467 = vmatpush.msra.mxu0 0.0
      %468 = vmatpush.msra.mxu0 0.0
      %469 = vmatpush.msra.mxu0 %v371
      %470 = vmatpush.msra.mxu0 %v370
      %471 = vmatpush.msra.mxu0 %v369
      %472 = vmatpush.msra.mxu0 %v368
      %473 = vmatpush.msra.mxu0 %v367
      %474 = vmatpush.msra.mxu0 %v366
      %475 = vmatmul.f32.gmra.mxu0 %v457
      %v476 = vpop.f32.mrf.mxu0
      %v477 = vadd.f32 0.0, %v476
      %478 = vdwg.mxu0
      %vm479 = vcmp.lt.s32.totalorder %v278, 6
      %vm480 = vmand %vm398, %vm479
      %v481 = vsel %vm480, 0.16666667, 0.0
      %vm482 = vcmask 130048
      %v484 = vsel %vm482, %v481, 0
      %486 = vmatpush.msra.mxu0 0.0
      %487 = vmatpush.msra.mxu0 0.0
      %488 = vmatpush.msra.mxu0 0.0
      %489 = vmatpush.msra.mxu0 0.0
      %490 = vmatpush.msra.mxu0 0.0
      %491 = vmatpush.msra.mxu0 0.0
      %492 = vmatpush.msra.mxu0 0.0
      %493 = vmatpush.msra.mxu0 0.0
      %494 = vmatpush.msra.mxu0 0.0
      %495 = vmatpush.msra.mxu0 0.0
      %496 = vmatpush.msra.mxu0 0.0
      %497 = vmatpush.msra.mxu0 0.0
      %498 = vmatpush.msra.mxu0 0.0
      %499 = vmatpush.msra.mxu0 0.0
      %500 = vmatpush.msra.mxu0 %v397
      %501 = vmatpush.msra.mxu0 %v396
      %502 = vmatmul.f32.gmra.mxu0 %v484
      %v503 = vpop.f32.mrf.mxu0
      %v504 = vadd.f32 0.0, %v503
      %505 = vdwg.mxu0
      %vm506 = vcmp.ge.s32.totalorder %v278, 8
      %vm507 = vcmp.lt.s32.totalorder %v278, 14
      %vm508 = vmand %vm506, %vm507
      %v509 = vsel %vm508, 0.16666667, 0.0
      %v511 = vsel %vm482, %v509, 0
      %513 = vmatpush.msra.mxu0 0.0
      %514 = vmatpush.msra.mxu0 0.0
      %515 = vmatpush.msra.mxu0 0.0
      %516 = vmatpush.msra.mxu0 0.0
      %517 = vmatpush.msra.mxu0 0.0
      %518 = vmatpush.msra.mxu0 0.0
      %519 = vmatpush.msra.mxu0 0.0
      %520 = vmatpush.msra.mxu0 0.0
      %521 = vmatpush.msra.mxu0 0.0
      %522 = vmatpush.msra.mxu0 0.0
      %523 = vmatpush.msra.mxu0 0.0
      %524 = vmatpush.msra.mxu0 0.0
      %525 = vmatpush.msra.mxu0 0.0
      %526 = vmatpush.msra.mxu0 0.0
      %527 = vmatpush.msra.mxu0 %v397
      %528 = vmatpush.msra.mxu0 %v396
      %529 = vmatmul.f32.gmra.mxu0 %v511
      %v530 = vpop.f32.mrf.mxu0
      %v531 = vadd.f32 0.0, %v530
      %532 = vdwg.mxu0
      %v533 = vld [vmem:[%s1 + $0x180] sm:$0xff]
      %v534 = vld [vmem:[%s1 + $0x188] sm:$0xff]
      %v535 = vld [vmem:[%s1 + $0x190] sm:$0xff]
      %v536 = vld [vmem:[%s1 + $0x198] sm:$0xff]
      %v537 = vld [vmem:[%s1 + $0x1a0] sm:$0xff]
      %v538 = vld [vmem:[%s1 + $0x1a8] sm:$0xff]
      %v539 = vld [vmem:[%s1 + $0x1b0] sm:$0xff]
      %v540 = vld [vmem:[%s1 + $0x1b8] sm:$0xff]
      %v541 = vld [vmem:[%s1 + $0x1c0] sm:$0xff]
      %v542 = vld [vmem:[%s1 + $0x1c8] sm:$0xff]
      %v543 = vld [vmem:[%s1 + $0x1d0] sm:$0xff]
      %v544 = vld [vmem:[%s1 + $0x1d8] sm:$0xff]
      %v545 = vld [vmem:[%s1 + $0x1e0] sm:$0xff]
      %v546 = vld [vmem:[%s1 + $0x1e8] sm:$0xff]
      %v547 = vld [vmem:[%s1 + $0x1f0] sm:$0xff]
      %v548 = vld [vmem:[%s1 + $0x1f8] sm:$0xff]
      %v549 = vld [vmem:[%s1 + $0x200] sm:$0xff]
      %v550 = vld [vmem:[%s1 + $0x208] sm:$0xff]
      %v551 = vld [vmem:[%s1 + $0x210] sm:$0xff]
      %v552 = vld [vmem:[%s1 + $0x218] sm:$0xff]
      %v553 = vld [vmem:[%s1 + $0x220] sm:$0xff]
      %v554 = vld [vmem:[%s1 + $0x228] sm:$0xff]
      %v555 = vld [vmem:[%s1 + $0x230] sm:$0xff]
      %v556 = vld [vmem:[%s1 + $0x238] sm:$0xff]
      %v557 = vld [vmem:[%s1 + $0x240] sm:$0xff]
      %v558 = vld [vmem:[%s1 + $0x248] sm:$0xff]
      %v559 = vld [vmem:[%s1 + $0x250] sm:$0xff]
      %v560 = vld [vmem:[%s1 + $0x258] sm:$0xff]
      %v561 = vld [vmem:[%s1 + $0x260] sm:$0xff]
      %v562 = vld [vmem:[%s1 + $0x268] sm:$0xff]
      %v563 = vld [vmem:[%s1 + $0x270] sm:$0xff]
      %v564 = vld [vmem:[%s1 + $0x278] sm:$0xff]
      %565 = vmatpush.msra.mxu0 %v564
      %566 = vmatpush.msra.mxu0 %v563
      %567 = vmatpush.msra.mxu0 %v562
      %568 = vmatpush.msra.mxu0 %v561
      %569 = vmatpush.msra.mxu0 %v560
      %570 = vmatpush.msra.mxu0 %v559
      %571 = vmatpush.msra.mxu0 %v558
      %572 = vmatpush.msra.mxu0 %v557
      %573 = vmatpush.msra.mxu0 %v556
      %574 = vmatpush.msra.mxu0 %v555
      %575 = vmatpush.msra.mxu0 %v554
      %576 = vmatpush.msra.mxu0 %v553
      %577 = vmatpush.msra.mxu0 %v552
      %578 = vmatpush.msra.mxu0 %v551
      %579 = vmatpush.msra.mxu0 %v550
      %580 = vmatpush.msra.mxu0 %v549
      %581 = vmatmul.f32.gmra.mxu0 %v450
      %v582 = vpop.f32.mrf.mxu0
      %v583 = vadd.f32 0.0, %v582
      %584 = vdwg.mxu0
      %585 = vmatpush.msra.mxu0 %v548
      %586 = vmatpush.msra.mxu0 %v547
      %587 = vmatpush.msra.mxu0 %v546
      %588 = vmatpush.msra.mxu0 %v545
      %589 = vmatpush.msra.mxu0 %v544
      %590 = vmatpush.msra.mxu0 %v543
      %591 = vmatpush.msra.mxu0 %v542
      %592 = vmatpush.msra.mxu0 %v541
      %593 = vmatpush.msra.mxu0 %v540
      %594 = vmatpush.msra.mxu0 %v539
      %595 = vmatpush.msra.mxu0 %v538
      %596 = vmatpush.msra.mxu0 %v537
      %597 = vmatpush.msra.mxu0 %v536
      %598 = vmatpush.msra.mxu0 %v535
      %599 = vmatpush.msra.mxu0 %v534
      %600 = vmatpush.msra.mxu0 %v533
      %601 = vmatmul.f32.gmra.mxu0 %v423
      %v602 = vpop.f32.mrf.mxu0
      %v603 = vadd.f32 %v583, %v602
      %604 = vdwg.mxu0
      %v605 = vld [vmem:[%s1 + $0x280] sm:$0xff]
      %v606 = vld [vmem:[%s1 + $0x288] sm:$0xff]
      %v607 = vld [vmem:[%s1 + $0x290] sm:$0xff]
      %v608 = vld [vmem:[%s1 + $0x298] sm:$0xff]
      %v609 = vld [vmem:[%s1 + $0x2a0] sm:$0xff]
      %v610 = vld [vmem:[%s1 + $0x2a8] sm:$0xff]
      %v611 = vld [vmem:[%s1 + $0x2b0] sm:$0xff]
      %v612 = vld [vmem:[%s1 + $0x2b8] sm:$0xff]
      %v613 = vld [vmem:[%s1 + $0x2c0] sm:$0xff]
      %v614 = vld [vmem:[%s1 + $0x2c8] sm:$0xff]
      %v615 = vld [vmem:[%s1 + $0x2d0] sm:$0xff]
      %v616 = vld [vmem:[%s1 + $0x2d8] sm:$0xff]
      %v617 = vld [vmem:[%s1 + $0x2e0] sm:$0xff]
      %v618 = vld [vmem:[%s1 + $0x2e8] sm:$0xff]
      %v619 = vld [vmem:[%s1 + $0x2f0] sm:$0xff]
      %v620 = vld [vmem:[%s1 + $0x2f8] sm:$0xff]
      %621 = vmatpush.msra.mxu0 %v620
      %622 = vmatpush.msra.mxu0 %v619
      %623 = vmatpush.msra.mxu0 %v618
      %624 = vmatpush.msra.mxu0 %v617
      %625 = vmatpush.msra.mxu0 %v616
      %626 = vmatpush.msra.mxu0 %v615
      %627 = vmatpush.msra.mxu0 %v614
      %628 = vmatpush.msra.mxu0 %v613
      %629 = vmatpush.msra.mxu0 %v612
      %630 = vmatpush.msra.mxu0 %v611
      %631 = vmatpush.msra.mxu0 %v610
      %632 = vmatpush.msra.mxu0 %v609
      %633 = vmatpush.msra.mxu0 %v608
      %634 = vmatpush.msra.mxu0 %v607
      %635 = vmatpush.msra.mxu0 %v606
      %636 = vmatpush.msra.mxu0 %v605
      %637 = vmatmul.f32.gmra.mxu0 %v477
      %v638 = vpop.f32.mrf.mxu0
      %v639 = vadd.f32 0.0, %v638
      %640 = vdwg.mxu0
      %v641 = vadd.f32 %v603, %v639
      %v642 = vld [vmem:[%s1 + $0x300] sm:$0xff]
      %v643 = vld [vmem:[%s1 + $0x308] sm:$0xff]
      %v644 = vld [vmem:[%s1 + $0x310] sm:$0xff]
      %v645 = vld [vmem:[%s1 + $0x318] sm:$0xff]
      %v646 = vld [vmem:[%s1 + $0x320] sm:$0xff]
      %v647 = vld [vmem:[%s1 + $0x328] sm:$0xff]
      %v648 = vld [vmem:[%s1 + $0x330] sm:$0xff]
      %v649 = vld [vmem:[%s1 + $0x338] sm:$0xff]
      %v650 = vld [vmem:[%s1 + $0x340] sm:$0xff]
      %v651 = vld [vmem:[%s1 + $0x348] sm:$0xff]
      %v652 = vld [vmem:[%s1 + $0x350] sm:$0xff]
      %v653 = vld [vmem:[%s1 + $0x358] sm:$0xff]
      %v654 = vld [vmem:[%s1 + $0x360] sm:$0xff]
      %v655 = vld [vmem:[%s1 + $0x368] sm:$0xff]
      %v656 = vld [vmem:[%s1 + $0x370] sm:$0xff]
      %v657 = vld [vmem:[%s1 + $0x378] sm:$0xff]
      %658 = vmatpush.msra.mxu0 %v657
      %659 = vmatpush.msra.mxu0 %v656
      %660 = vmatpush.msra.mxu0 %v655
      %661 = vmatpush.msra.mxu0 %v654
      %662 = vmatpush.msra.mxu0 %v653
      %663 = vmatpush.msra.mxu0 %v652
      %664 = vmatpush.msra.mxu0 %v651
      %665 = vmatpush.msra.mxu0 %v650
      %666 = vmatpush.msra.mxu0 %v649
      %667 = vmatpush.msra.mxu0 %v648
      %668 = vmatpush.msra.mxu0 %v647
      %669 = vmatpush.msra.mxu0 %v646
      %670 = vmatpush.msra.mxu0 %v645
      %671 = vmatpush.msra.mxu0 %v644
      %672 = vmatpush.msra.mxu0 %v643
      %673 = vmatpush.msra.mxu0 %v642
      %674 = vmatmul.f32.gmra.mxu0 %v504
      %v675 = vpop.f32.mrf.mxu0
      %v676 = vadd.f32 0.0, %v675
      %677 = vdwg.mxu0
      %v678 = vadd.f32 %v641, %v676
      %v679 = vld [vmem:[%s1 + $0x380] sm:$0xff]
      %v680 = vld [vmem:[%s1 + $0x388] sm:$0xff]
      %v681 = vld [vmem:[%s1 + $0x390] sm:$0xff]
      %v682 = vld [vmem:[%s1 + $0x398] sm:$0xff]
      %v683 = vld [vmem:[%s1 + $0x3a0] sm:$0xff]
      %v684 = vld [vmem:[%s1 + $0x3a8] sm:$0xff]
      %v685 = vld [vmem:[%s1 + $0x3b0] sm:$0xff]
      %v686 = vld [vmem:[%s1 + $0x3b8] sm:$0xff]
      %v687 = vld [vmem:[%s1 + $0x3c0] sm:$0xff]
      %v688 = vld [vmem:[%s1 + $0x3c8] sm:$0xff]
      %v689 = vld [vmem:[%s1 + $0x3d0] sm:$0xff]
      %v690 = vld [vmem:[%s1 + $0x3d8] sm:$0xff]
      %v691 = vld [vmem:[%s1 + $0x3e0] sm:$0xff]
      %v692 = vld [vmem:[%s1 + $0x3e8] sm:$0xff]
      %v693 = vld [vmem:[%s1 + $0x3f0] sm:$0xff]
      %v694 = vld [vmem:[%s1 + $0x3f8] sm:$0xff]
      %695 = vmatpush.msra.mxu0 %v694
      %696 = vmatpush.msra.mxu0 %v693
      %697 = vmatpush.msra.mxu0 %v692
      %698 = vmatpush.msra.mxu0 %v691
      %699 = vmatpush.msra.mxu0 %v690
      %700 = vmatpush.msra.mxu0 %v689
      %701 = vmatpush.msra.mxu0 %v688
      %702 = vmatpush.msra.mxu0 %v687
      %703 = vmatpush.msra.mxu0 %v686
      %704 = vmatpush.msra.mxu0 %v685
      %705 = vmatpush.msra.mxu0 %v684
      %706 = vmatpush.msra.mxu0 %v683
      %707 = vmatpush.msra.mxu0 %v682
      %708 = vmatpush.msra.mxu0 %v681
      %709 = vmatpush.msra.mxu0 %v680
      %710 = vmatpush.msra.mxu0 %v679
      %711 = vmatmul.f32.gmra.mxu0 %v531
      %v712 = vpop.f32.mrf.mxu0
      %v713 = vadd.f32 0.0, %v712
      %714 = vdwg.mxu0
      %v715 = vadd.f32 %v678, %v713
      %v716 = vld [vmem:[%s1 + $0x400] sm:$0x1]
      %v717 = vadd.f32 %v715, %v716
      %v718 = vmax.f32 %v717, 0.0
      %v719 = vperm.slane %v718, 0
      %720 = vst [vmem:[%s141] sm:$0xff] %v719
      %p721 = scmp.lt.s32.totalorder %s13, 7
      %s722 = scalar_select %p721, %s13, 7
      %s723 = smul.addr %s722, 8
      %s724 = scalar_lea.vmem %s2, %s723
      // Predicated region
      $region29: #{nn_v2_forward.1} parent=27 // pred_check
        %p725 = pneg %p78
      $region30: #{nn_v2_forward.1} parent=27 // pred_check_branch
        %727 = sbr.rel (%p725) target = $region32
      $region31: #{nn_v2_forward.1} parent=27 // pred_region
        _
      $region32: #{nn_v2_forward.1} parent=27 // pred_fallthru
        _
    $region28: #{nn_v2_forward.1} parent=5 // pred_fallthru
      _
    %p728 = scmp.le.s32.totalorder 2, %s8
    // Predicated region
    $region33: #{nn_v2_forward.1} parent=5 // pred_check
      %p729 = pneg %p728
    $region34: #{nn_v2_forward.1} parent=5 // pred_check_branch
      %731 = sbr.rel (%p729) target = $region36
    $region35: #{nn_v2_forward.1} parent=5 // pred_region
      %s732 = ssub.s32 %s8, 2
      // Predicated region
      $region37: #{nn_v2_forward.1} parent=35 // pred_check
        %p733 = pneg %p84
      $region38: #{nn_v2_forward.1} parent=35 // pred_check_branch
        %735 = sbr.rel (%p733) target = $region40
      $region39: #{nn_v2_forward.1} parent=35 // pred_region
        %p736 = scmp.lt.s32.totalorder %s14, 7
        %s737 = scalar_select %p736, %s14, 7
        %s738 = smul.addr %s737, 8
        %s739 = scalar_lea.vmem %s2, %s738
      $region40: #{nn_v2_forward.1} parent=35 // pred_fallthru
        _
    $region36: #{nn_v2_forward.1} parent=5 // pred_fallthru
      _
  $region6: #{nn_v2_forward.1} parent=0 // loop_footer
    %s12 = sadd.s32 1, %s8
  $region7: #{nn_v2_forward.1} parent=0 // loop_footer_branch
    %7 = sbr.rel target = $region3
  $region8: #{nn_v2_forward.1} parent=0 // loop_exit
    _

</llo_original>
